<compile_context>
chip_gen: v7x
topology: tpu7x:2x2x1
jax: 0.10.0
libtpu: 0.0.40
codegen_flags: <defaults>
</compile_context>

<pallas_src>
import jax
import jax.numpy as jnp
from jax.experimental import pallas as pl
from jax.experimental.pallas import tpu as pltpu

EPS = 1e-5
TILE = 512  # TM == TN keeps the global diagonal at local row == col


def _pos_diag_small_kernel(z_ref, o_ref):
    """Single full-array block: mask * (abs(Z) + eps) with an on-chip iota mask."""
    z = z_ref[...]
    row = jax.lax.broadcasted_iota(jnp.int32, z.shape, 0)
    col = jax.lax.broadcasted_iota(jnp.int32, z.shape, 1)
    out = jnp.where(row == col,
                    jnp.abs(z) + jnp.asarray(EPS, z.dtype),
                    jnp.zeros_like(z))
    o_ref[...] = out.astype(o_ref.dtype)


def _pos_diag_tiled_kernel(z_ref, o_ref):
    """Tiled path. z_ref always holds the (i, i) diagonal block of Z."""
    i = pl.program_id(0)
    j = pl.program_id(1)

    @pl.when(i != j)
    def _():
        # Off-diagonal tile: plain unmasked zero store, no VPU mask math,
        # and the input block content is irrelevant (never read here).
        o_ref[...] = jnp.zeros(o_ref.shape, o_ref.dtype)

    @pl.when(i == j)
    def _():
        z = z_ref[...]
        # Block is the (i, i) square tile with TM == TN, so the global
        # diagonal lies exactly at local row == col (no origin offset needed).
        row = jax.lax.broadcasted_iota(jnp.int32, z.shape, 0)
        col = jax.lax.broadcasted_iota(jnp.int32, z.shape, 1)
        out = jnp.where(row == col,
                        jnp.abs(z) + jnp.asarray(EPS, z.dtype),
                        jnp.zeros_like(z))
        o_ref[...] = out.astype(o_ref.dtype)


def pos_diag(Z: jax.Array, *, tile: int = TILE) -> jax.Array:
    """Pallas wrapper. Z: (n, n). Returns (n, n) positive-diagonal matrix."""
    n, m = Z.shape
    assert n == m, "Pos_Diag expects a square (n, n) matrix"

    if n <= tile:
        # Small-n path: one full-array block (block_shape == array shape).
        return pl.pallas_call(
            _pos_diag_small_kernel,
            out_shape=jax.ShapeDtypeStruct((n, n), Z.dtype),
            in_specs=[pl.BlockSpec((n, n), lambda: (0, 0))],
            out_specs=pl.BlockSpec((n, n), lambda: (0, 0)),
        )(Z)

    g = pl.cdiv(n, tile)
    return pl.pallas_call(
        _pos_diag_tiled_kernel,
        out_shape=jax.ShapeDtypeStruct((n, n), Z.dtype),
        grid=(g, g),  # j (columns) is the inner axis -> input block changes only with i
        in_specs=[pl.BlockSpec((tile, tile), lambda i, j: (i, i))],
        out_specs=pl.BlockSpec((tile, tile), lambda i, j: (i, j)),
        compiler_params=pltpu.CompilerParams(
            dimension_semantics=("parallel", "parallel")),
    )(Z)


def _reference(Z: jax.Array) -> jax.Array:
    n = Z.shape[0]
    return jnp.eye(n, dtype=Z.dtype) * (jnp.abs(Z) + EPS)


if __name__ == "__main__":
    key = jax.random.PRNGKey(0)

    # Small path (matches the module's typical tiny state dimension).
    n_small = 16
    Z_small = jax.random.normal(key, (n_small, n_small), dtype=jnp.float32)
    out_small = jax.block_until_ready(pos_diag(Z_small))
    assert out_small.shape == (n_small, n_small)
    assert out_small.dtype == Z_small.dtype
    assert jnp.allclose(out_small, _reference(Z_small), atol=1e-6), \
        "small-path mismatch vs reference"

    # Tiled path (exercises the 2x2 grid of 512x512 tiles).
    n_big = 1024
    Z_big = jax.random.normal(key, (n_big, n_big), dtype=jnp.float32)
    out_big = jax.block_until_ready(pos_diag(Z_big))
    assert out_big.shape == (n_big, n_big)
    assert out_big.dtype == Z_big.dtype
    assert jnp.allclose(out_big, _reference(Z_big), atol=1e-6), \
        "tiled-path mismatch vs reference"

    print("KERNEL_OK")
</pallas_src>

<mosaic_0001>
module attributes {stable_mosaic.version = 11 : i64} {
  func.func @_pos_diag_small_kernel(%arg0: memref<16x16xf32, #tpu.memory_space<vmem>>, %arg1: memref<16x16xf32, #tpu.memory_space<vmem>>) attributes {dimension_semantics = [], scalar_prefetch = 0 : i64, scratch_operands = 0 : i64, tpu.core_type = #tpu.core_type<tc>} {
    %c0 = arith.constant 0 : index
    %c0_0 = arith.constant 0 : index
    %0 = vector.load %arg0[%c0, %c0_0] : memref<16x16xf32, #tpu.memory_space<vmem>>, vector<16x16xf32>
    %1 = tpu.iota {dimensions = array<i32: 0>} : vector<16x16xi32>
    %2 = tpu.iota {dimensions = array<i32: 1>} : vector<16x16xi32>
    %3 = arith.cmpi eq, %1, %2 : vector<16x16xi32>
    %4 = math.absf %0 : vector<16x16xf32>
    %cst = arith.constant 9.99999974E-6 : f32
    %5 = vector.broadcast %cst : f32 to vector<16x16xf32>
    %6 = arith.addf %4, %5 : vector<16x16xf32>
    %cst_1 = arith.constant 0.000000e+00 : f32
    %7 = vector.broadcast %cst_1 : f32 to vector<16x16xf32>
    %8 = arith.select %3, %6, %7 : vector<16x16xi1>, vector<16x16xf32>
    %c0_2 = arith.constant 0 : index
    %c0_3 = arith.constant 0 : index
    %9 = vector.load %arg1[%c0_2, %c0_3] : memref<16x16xf32, #tpu.memory_space<vmem>>, vector<16x16xf32>
    tpu.vector_store %arg1[%c0_2, %c0_3], %8 {strides = array<i32>} : memref<16x16xf32, #tpu.memory_space<vmem>>, vector<16x16xf32>,
    return
  }
}

</mosaic_0001>

<llo_original>
// kernel: tpu_custom_call.1
$region0: #{tpu_custom_call.1}
  #allocation0 [shape = 'u32[]', space=smem, size = 0x4, offset = 0x4, fixed_abs, tag = 'smem constant byte address 0x4 - core index']
  #allocation1 [shape = 'u32[144,128]{1,0:T(1,128)}', space=vmem, size = 0x12000, scoped, tag = 'internal scratch']
  %s0 = inlined_call_operand.hbm [shape: f32[16,16], index: 0, kind: input, shape index: {}]
  %s1 = inlined_call_operand.hbm [shape: f32[16,16], index: 1, kind: output, shape index: {}]
  %s2 = sld [smem:[#allocation0]]
  $region18: #{tpu_custom_call.1} parent=0
    _
  %s4 = ssub.s32 1, %s2
  %s5 = scalar_select 0, %s4, %s2
  $region1: #{tpu_custom_call.1} parent=0
    #allocation2 [shape = 'u8[8192]{0}', space=vmem, size = 0x2000, scoped, tag = 'input window, operand 0, single buffered']
    #allocation3 [shape = 's32[1]{0}', space=sflag, size = 0x4, scoped, tag = 'scoped memory for tpu_custom_call.1']
    #allocation4 [shape = 's32[1]{0}', space=sflag, size = 0x4, scoped, tag = 'scoped memory for tpu_custom_call.1']
    #allocation5 [shape = 'u8[8192]{0}', space=vmem, size = 0x2000, scoped, tag = 'output window, operand 0, single buffered']
    %6 = vsyncpa [#allocation3], 0
    %7 = vsyncpa [#allocation4], 0
    // Predicated region
    $region2: #{tpu_custom_call.1} parent=1 // pred_check
      _
    $region3: #{tpu_custom_call.1} parent=1 // pred_check_branch
      %9 = sbr.rel (0) target = $region5
    $region4: #{tpu_custom_call.1} parent=1 // pred_region
      %s11 = ssub.s32 256, 256
      %12 = vsyncadd [#allocation3], %s11
      %s13 = sshll.u32 [#allocation2], 4
      %s14 = int_to_ptr.vmem [resolvable:$true] %s13
      %19 = dma.hbm_to_vmem [thread:$0]  %s0, 256, %s14, [#allocation3], 128, 128, 8
    $region5: #{tpu_custom_call.1} parent=1 // pred_fallthru
      _
    // Predicated region
    $region6: #{tpu_custom_call.1} parent=1 // pred_check
      _
    $region7: #{tpu_custom_call.1} parent=1 // pred_check_branch
      %21 = sbr.rel (0) target = $region9
    $region8: #{tpu_custom_call.1} parent=1 // pred_region
      %22 = dma.done [#allocation3], 256
    $region9: #{tpu_custom_call.1} parent=1 // pred_fallthru
      _
    %v23 = vld [vmem:[#allocation2] sm:$0xff]
    %v24 = vld [vmem:[#allocation2 + $0x8] sm:$0xff]
    %v25 = vlaneseq
    %v26 = vshrl.u32 %v25, 7
    %v27 = vadd.s32 %v26, 8
    %v28 = vlaneseq
    %v29 = vand.u32 %v28, 127
    %vm30 = vcmp.eq.s32.totalorder %v26, %v29
    %vm31 = vcmp.eq.s32.totalorder %v27, %v29
    %v32 = vand.u32 2147483647, %v23
    %v33 = vand.u32 2147483647, %v24
    %v34 = vadd.f32 %v32, 1e-05
    %v35 = vadd.f32 %v33, 1e-05
    %v36 = vsel %vm30, %v34, 0.0
    %v37 = vsel %vm31, %v35, 0.0
    %vm38 = vcmask 130048
    %39 = vst.msk [vmem:[#allocation5] sm:$0xff] %vm38, %v36
    %40 = vst.msk [vmem:[#allocation5 + $0x8] sm:$0xff] %vm38, %v37
    // Predicated region
    $region10: #{tpu_custom_call.1} parent=1 // pred_check
      _
    $region11: #{tpu_custom_call.1} parent=1 // pred_check_branch
      %42 = sbr.rel (0) target = $region13
    $region12: #{tpu_custom_call.1} parent=1 // pred_region
      %s44 = ssub.s32 256, 256
      %45 = vsyncadd [#allocation4], %s44
      %s46 = sshll.u32 [#allocation5], 4
      %s47 = int_to_ptr.vmem [resolvable:$true] %s46
      %52 = dma.vmem_to_hbm [thread:$0]  %s47, 256, %s1, [#allocation4], 128, 128, 8
    $region13: #{tpu_custom_call.1} parent=1 // pred_fallthru
      _
    // Predicated region
    $region14: #{tpu_custom_call.1} parent=1 // pred_check
      _
    $region15: #{tpu_custom_call.1} parent=1 // pred_check_branch
      %54 = sbr.rel (0) target = $region17
    $region16: #{tpu_custom_call.1} parent=1 // pred_region
      %55 = dma.done [#allocation4], 256
    $region17: #{tpu_custom_call.1} parent=1 // pred_fallthru
      _
    %56 = vsyncpa [#allocation3], 1
    %57 = vsyncpa [#allocation4], 1

</llo_original>
